<compile_context>
chip_gen: v7x
topology: tpu7x:2x2x1
jax: 0.10.0
libtpu: 0.0.40
codegen_flags: <defaults>
</compile_context>

<pallas_src>
import functools

import jax
import jax.numpy as jnp
from jax.experimental import pallas as pl
from jax.experimental.pallas import tpu as pltpu


_LANE = 128
_DEFAULT_VMEM_CAP = 64 * 1024 * 1024   # assume v7x (smallest VMEM) if undetectable


def _cdiv(a, b):
    return -(-a // b)


def _round_up(x, m):
    return _cdiv(x, m) * m


def _round_down(x, m):
    return (x // m) * m


def _sublane_for(dtype):
    # rows per packed vreg tile: 8 for 32-bit, 16 for 16-bit, 32 for 8-bit
    return max(8, 32 // jnp.dtype(dtype).itemsize)


def _vmem_capacity_bytes():
    try:
        info = pltpu.get_tpu_info()
        cap = getattr(info, "vmem_capacity_bytes", None)
        if cap:
            return int(cap)
    except Exception:
        pass
    return _DEFAULT_VMEM_CAP


def _pick_row_tile(bc, bytes_per_row, target_block_bytes, sublane):
    """Rows per block: fits the VMEM budget, is a multiple of the sublane
    packing (or == bc for tiny bc), and is capped so the 'parallel' row grid
    keeps >= 4 steps whenever bc allows (megacore + pipeline depth)."""
    if bc <= sublane:
        return bc
    budget_rows = max(sublane,
                      _round_down(target_block_bytes // max(bytes_per_row, 1), sublane))
    quarter = max(sublane, _round_up(_cdiv(bc, 4), sublane))
    return max(sublane, min(budget_rows, quarter))


# ----------------------------------------------------------------------------
# Kernels
# ----------------------------------------------------------------------------
def _adain_fused_kernel(x_ref, w_ref, b_ref, o_ref, *, eps, inv_count):
    """Single-pass path: the whole spatial row fits in one block.

    x_ref/o_ref: (row_tile, hw)   w_ref/b_ref: (row_tile, 1) per-step blocks.
    """
    x = x_ref[...].astype(jnp.float32)
    s = jnp.sum(x, axis=-1, keepdims=True)
    sq = jnp.sum(x * x, axis=-1, keepdims=True)
    mean = s * inv_count
    var = jnp.maximum(sq * inv_count - mean * mean, 0.0)   # biased var (training=True)
    scale = jax.lax.rsqrt(var + eps) * w_ref[...]           # rsqrt -> EUP slot
    shift = b_ref[...] - mean * scale
    # Re-read x instead of reusing the f32 upcast so the compiler does not
    # keep a block-sized f32 temp live across the reduction dependency.
    o_ref[...] = (x_ref[...].astype(jnp.float32) * scale + shift).astype(o_ref.dtype)


def _stats_kernel(x_ref, w_ref, b_ref, scale_ref, shift_ref, sum_ref, sq_ref,
                  *, eps, inv_count, hw, hw_tile, ragged):
    """hw-tiled pass 1: accumulate sum/sumsq over the (arbitrary) hw axis.

    The (row_tile, 1) scale/shift epilogue is recomputed every hw step (cheap
    vector math); only the value present after the last step is written back.
    No pl.program_id inside pl.when bodies (lowering restriction).
    """
    k = pl.program_id(1)

    @pl.when(k == 0)
    def _():
        sum_ref[...] = jnp.zeros_like(sum_ref)
        sq_ref[...] = jnp.zeros_like(sq_ref)

    x = x_ref[...].astype(jnp.float32)
    if ragged:  # mask the out-of-range lane tail of the last hw tile
        col = jax.lax.broadcasted_iota(jnp.int32, x.shape, 1) + k * hw_tile
        x = jnp.where(col < hw, x, 0.0)
    sum_ref[...] += jnp.sum(x, axis=-1, keepdims=True)
    sq_ref[...] += jnp.sum(x * x, axis=-1, keepdims=True)

    mean = sum_ref[...] * inv_count
    var = jnp.maximum(sq_ref[...] * inv_count - mean * mean, 0.0)
    scale = jax.lax.rsqrt(var + eps) * w_ref[...]
    scale_ref[...] = scale
    shift_ref[...] = b_ref[...] - mean * scale


def _apply_kernel(x_ref, scale_ref, shift_ref, o_ref):
    """hw-tiled pass 2: streaming y = x*scale + shift."""
    o_ref[...] = (x_ref[...].astype(jnp.float32) * scale_ref[...]
                  + shift_ref[...]).astype(o_ref.dtype)


# ----------------------------------------------------------------------------
# Wrapper
# ----------------------------------------------------------------------------
def adaptive_instance_norm_2d(x, weight, bias, eps=1e-5,
                              force_hw_tiling=False, hw_tile=None):
    """x: (b, c, h, w); weight, bias: (b*c,). Returns (b, c, h, w)."""
    b, c, h, w = x.shape
    bc = b * c
    hw = h * w
    dtype = x.dtype
    itemsize = jnp.dtype(dtype).itemsize
    sublane = _sublane_for(dtype)

    x2d = x.reshape(bc, hw)
    w2d = weight.reshape(bc, 1).astype(jnp.float32)
    b2d = bias.reshape(bc, 1).astype(jnp.float32)

    cap = _vmem_capacity_bytes()                 # generation-aware budgets
    target_block_bytes = max(cap // 16, 1 << 20)  # ~8 MiB on 128 MiB, ~4 MiB on 64 MiB
    vmem_limit_bytes = (cap * 5) // 8             # 80 MiB / 40 MiB

    hw_lanes = _round_up(hw, _LANE)              # VMEM lane footprint of one row
    row_bytes = hw_lanes * itemsize
    inv_count = 1.0 / float(hw)

    min_rows = bc if bc < sublane else sublane
    single_block_ok = (min_rows * row_bytes <= target_block_bytes) and not force_hw_tiling

    if single_block_ok:
        # -------- single-pass path: full spatial extent in one block ----------
        row_tile = _pick_row_tile(bc, row_bytes, target_block_bytes, sublane)
        grid = (_cdiv(bc, row_tile),)
        out = pl.pallas_call(
            functools.partial(_adain_fused_kernel, eps=float(eps), inv_count=inv_count),
            out_shape=jax.ShapeDtypeStruct((bc, hw), dtype),
            grid_spec=pltpu.PrefetchScalarGridSpec(
                num_scalar_prefetch=0,
                grid=grid,
                in_specs=[
                    pl.BlockSpec((row_tile, hw), lambda i: (i, 0)),
                    pl.BlockSpec((row_tile, 1), lambda i: (i, 0)),
                    pl.BlockSpec((row_tile, 1), lambda i: (i, 0)),
                ],
                out_specs=pl.BlockSpec((row_tile, hw), lambda i: (i, 0)),
            ),
            compiler_params=pltpu.CompilerParams(
                dimension_semantics=("parallel",),
                vmem_limit_bytes=vmem_limit_bytes,
            ),
        )(x2d, w2d, b2d)
    else:
        # -------- hw-tiled two-kernel path (large images / small VMEM) --------
        if hw_tile is None:
            hw_tile = max(_LANE,
                          _round_down(target_block_bytes // (sublane * itemsize), _LANE))
        hw_tile = min(_round_up(hw_tile, _LANE), hw_lanes)
        n_hw = _cdiv(hw, hw_tile)
        ragged = (hw % hw_tile) != 0
        row_tile = _pick_row_tile(bc, hw_tile * itemsize, target_block_bytes, sublane)
        grid = (_cdiv(bc, row_tile), n_hw)

        scale, shift = pl.pallas_call(
            functools.partial(_stats_kernel, eps=float(eps), inv_count=inv_count,
                              hw=hw, hw_tile=hw_tile, ragged=ragged),
            out_shape=(jax.ShapeDtypeStruct((bc, 1), jnp.float32),
                       jax.ShapeDtypeStruct((bc, 1), jnp.float32)),
            grid_spec=pltpu.PrefetchScalarGridSpec(
                num_scalar_prefetch=0,
                grid=grid,
                in_specs=[
                    pl.BlockSpec((row_tile, hw_tile), lambda i, k: (i, k)),
                    pl.BlockSpec((row_tile, 1), lambda i, k: (i, 0)),
                    pl.BlockSpec((row_tile, 1), lambda i, k: (i, 0)),
                ],
                out_specs=[
                    pl.BlockSpec((row_tile, 1), lambda i, k: (i, 0)),
                    pl.BlockSpec((row_tile, 1), lambda i, k: (i, 0)),
                ],
                scratch_shapes=[
                    pltpu.VMEM((row_tile, 1), jnp.float32),
                    pltpu.VMEM((row_tile, 1), jnp.float32),
                ],
            ),
            compiler_params=pltpu.CompilerParams(
                dimension_semantics=("parallel", "arbitrary"),
                vmem_limit_bytes=vmem_limit_bytes,
            ),
        )(x2d, w2d, b2d)

        out = pl.pallas_call(
            _apply_kernel,
            out_shape=jax.ShapeDtypeStruct((bc, hw), dtype),
            grid_spec=pltpu.PrefetchScalarGridSpec(
                num_scalar_prefetch=0,
                grid=grid,
                in_specs=[
                    pl.BlockSpec((row_tile, hw_tile), lambda i, k: (i, k)),
                    pl.BlockSpec((row_tile, 1), lambda i, k: (i, 0)),
                    pl.BlockSpec((row_tile, 1), lambda i, k: (i, 0)),
                ],
                out_specs=pl.BlockSpec((row_tile, hw_tile), lambda i, k: (i, k)),
            ),
            compiler_params=pltpu.CompilerParams(
                dimension_semantics=("parallel", "parallel"),
                vmem_limit_bytes=vmem_limit_bytes,
            ),
        )(x2d, scale, shift)

    return out.reshape(b, c, h, w)


class AdaptiveInstanceNorm2dPallas:
    """Mirror of the PyTorch module; weight/bias must be assigned before use."""

    def __init__(self, num_features, eps=1e-5, momentum=0.1):
        self.num_features = num_features
        self.eps = eps
        self.momentum = momentum
        self.weight = None   # expected shape (b * num_features,)
        self.bias = None     # expected shape (b * num_features,)
        # Buffers exist for parity; with training=True they do not affect output.
        self.running_mean = jnp.zeros((num_features,), jnp.float32)
        self.running_var = jnp.ones((num_features,), jnp.float32)
        # TODO(synk): running_mean/running_var momentum update (a buffer
        # side-effect in PyTorch) is not materialized; the forward output does
        # not depend on it.

    def __call__(self, x):
        assert self.weight is not None and self.bias is not None, \
            "Please assign weight and bias before calling AdaIN!"
        return adaptive_instance_norm_2d(x, self.weight, self.bias, eps=self.eps)


def _reference(x, weight, bias, eps=1e-5):
    """Pure-JAX reference matching F.batch_norm(training=True) semantics."""
    b, c, h, w = x.shape
    xr = x.reshape(b * c, h * w).astype(jnp.float32)
    mean = xr.mean(axis=1, keepdims=True)
    var = ((xr - mean) ** 2).mean(axis=1, keepdims=True)
    y = (xr - mean) / jnp.sqrt(var + eps)
    y = y * weight.reshape(-1, 1) + bias.reshape(-1, 1)
    return y.reshape(b, c, h, w).astype(x.dtype)


if __name__ == "__main__":
    b, c, h, w = 2, 4, 16, 16
    key = jax.random.PRNGKey(0)
    kx, kw, kb = jax.random.split(key, 3)

    x = jax.random.normal(kx, (b, c, h, w), dtype=jnp.float32)
    # AdaIN params (normally produced by the MUNIT MLP) — deterministic init.
    weight = jax.random.normal(kw, (b * c,), dtype=jnp.float32) * 0.5 + 1.0
    bias = jax.random.normal(kb, (b * c,), dtype=jnp.float32) * 0.1

    adain = AdaptiveInstanceNorm2dPallas(num_features=c)
    adain.weight = weight
    adain.bias = bias

    out = jax.block_until_ready(adain(x))
    ref = _reference(x, weight, bias)
    assert out.shape == (b, c, h, w)
    assert jnp.allclose(out, ref, atol=1e-4, rtol=1e-4), "mismatch vs reference"

    # Exercise non-aligned shapes (bc not multiple of 8, hw not multiple of 128).
    b2, c2, h2, w2 = 2, 5, 11, 13
    x2 = jax.random.normal(kx, (b2, c2, h2, w2), dtype=jnp.float32)
    w2v = jax.random.normal(kw, (b2 * c2,), dtype=jnp.float32) * 0.5 + 1.0
    b2v = jax.random.normal(kb, (b2 * c2,), dtype=jnp.float32) * 0.1
    ref2 = _reference(x2, w2v, b2v)

    out2 = jax.block_until_ready(adaptive_instance_norm_2d(x2, w2v, b2v))
    assert jnp.allclose(out2, ref2, atol=1e-4, rtol=1e-4), "mismatch (fused path)"

    # Exercise the hw-tiled (large-image) fallback path at small shapes with a
    # small hw tile so that multi-step accumulation + ragged-tail masking run.
    out3 = jax.block_until_ready(
        adaptive_instance_norm_2d(x2, w2v, b2v, force_hw_tiling=True, hw_tile=128))
    assert jnp.allclose(out3, ref2, atol=1e-4, rtol=1e-4), "mismatch (tiled path)"

    print("KERNEL_OK")
</pallas_src>

<mosaic_0001>
module attributes {stable_mosaic.version = 11 : i64} {
  func.func @_adain_fused_kernel(%arg0: i32, %arg1: memref<8x256xf32, #tpu.memory_space<vmem>>, %arg2: memref<8x1xf32, #tpu.memory_space<vmem>>, %arg3: memref<8x1xf32, #tpu.memory_space<vmem>>, %arg4: memref<8x256xf32, #tpu.memory_space<vmem>>) attributes {dimension_semantics = [#tpu.dimension_semantics<parallel>], iteration_bounds = array<i64: 1>, scalar_prefetch = 0 : i64, scratch_operands = 0 : i64, tpu.core_type = #tpu.core_type<tc>, window_params = [{transform_indices = @transform_0, window_bounds = array<i64: 8, 256>}, {transform_indices = @transform_1, window_bounds = array<i64: 8, 1>}, {transform_indices = @transform_2, window_bounds = array<i64: 8, 1>}, {transform_indices = @transform_3, window_bounds = array<i64: 8, 256>}]} {
    %c0 = arith.constant 0 : index
    %c0_0 = arith.constant 0 : index
    %0 = vector.load %arg1[%c0, %c0_0] : memref<8x256xf32, #tpu.memory_space<vmem>>, vector<8x256xf32>
    %cst = arith.constant dense<0.000000e+00> : vector<8xf32>
    %1 = vector.multi_reduction <add>, %0, %cst [1] : vector<8x256xf32> to vector<8xf32>
    %2 = vector.shape_cast %1 : vector<8xf32> to vector<8x1xf32>
    %3 = arith.mulf %0, %0 : vector<8x256xf32>
    %cst_1 = arith.constant dense<0.000000e+00> : vector<8xf32>
    %4 = vector.multi_reduction <add>, %3, %cst_1 [1] : vector<8x256xf32> to vector<8xf32>
    %5 = vector.shape_cast %4 : vector<8xf32> to vector<8x1xf32>
    %cst_2 = arith.constant 3.906250e-03 : f32
    %6 = vector.broadcast %cst_2 : f32 to vector<8x1xf32>
    %7 = arith.mulf %2, %6 : vector<8x1xf32>
    %cst_3 = arith.constant 3.906250e-03 : f32
    %8 = vector.broadcast %cst_3 : f32 to vector<8x1xf32>
    %9 = arith.mulf %5, %8 : vector<8x1xf32>
    %10 = arith.mulf %7, %7 : vector<8x1xf32>
    %11 = arith.subf %9, %10 : vector<8x1xf32>
    %cst_4 = arith.constant 0.000000e+00 : f32
    %12 = vector.broadcast %cst_4 : f32 to vector<8x1xf32>
    %13 = arith.maximumf %11, %12 : vector<8x1xf32>
    %cst_5 = arith.constant 9.99999974E-6 : f32
    %14 = vector.broadcast %cst_5 : f32 to vector<8x1xf32>
    %15 = arith.addf %13, %14 : vector<8x1xf32>
    %16 = math.rsqrt %15 : vector<8x1xf32>
    %c0_6 = arith.constant 0 : index
    %c0_7 = arith.constant 0 : index
    %17 = vector.load %arg2[%c0_6, %c0_7] : memref<8x1xf32, #tpu.memory_space<vmem>>, vector<8x1xf32>
    %18 = arith.mulf %16, %17 : vector<8x1xf32>
    %c0_8 = arith.constant 0 : index
    %c0_9 = arith.constant 0 : index
    %19 = vector.load %arg3[%c0_8, %c0_9] : memref<8x1xf32, #tpu.memory_space<vmem>>, vector<8x1xf32>
    %20 = arith.mulf %7, %18 : vector<8x1xf32>
    %21 = arith.subf %19, %20 : vector<8x1xf32>
    %c0_10 = arith.constant 0 : index
    %c0_11 = arith.constant 0 : index
    %22 = vector.load %arg1[%c0_10, %c0_11] : memref<8x256xf32, #tpu.memory_space<vmem>>, vector<8x256xf32>
    %23 = vector.broadcast %18 : vector<8x1xf32> to vector<8x256xf32>
    %24 = arith.mulf %22, %23 : vector<8x256xf32>
    %25 = vector.broadcast %21 : vector<8x1xf32> to vector<8x256xf32>
    %26 = arith.addf %24, %25 : vector<8x256xf32>
    %c0_12 = arith.constant 0 : index
    %c0_13 = arith.constant 0 : index
    %27 = vector.load %arg4[%c0_12, %c0_13] : memref<8x256xf32, #tpu.memory_space<vmem>>, vector<8x256xf32>
    tpu.vector_store %arg4[%c0_12, %c0_13], %26 {strides = array<i32>} : memref<8x256xf32, #tpu.memory_space<vmem>>, vector<8x256xf32>,
    return
  }
  func.func @transform_0(%arg0: i32) -> (i32, i32) {
    %c0_i32 = arith.constant 0 : i32
    %c0_i32_0 = arith.constant 0 : i32
    return %arg0, %c0_i32 : i32, i32
  }
  func.func @transform_1(%arg0: i32) -> (i32, i32) {
    %c0_i32 = arith.constant 0 : i32
    %c0_i32_0 = arith.constant 0 : i32
    return %arg0, %c0_i32 : i32, i32
  }
  func.func @transform_2(%arg0: i32) -> (i32, i32) {
    %c0_i32 = arith.constant 0 : i32
    %c0_i32_0 = arith.constant 0 : i32
    return %arg0, %c0_i32 : i32, i32
  }
  func.func @transform_3(%arg0: i32) -> (i32, i32) {
    %c0_i32 = arith.constant 0 : i32
    %c0_i32_0 = arith.constant 0 : i32
    return %arg0, %c0_i32 : i32, i32
  }
}

</mosaic_0001>

<llo_original>
// kernel: tpu_custom_call.1
$region0: #{tpu_custom_call.1}
  #allocation0 [shape = 'u32[]', space=smem, size = 0x4, offset = 0x4, fixed_abs, tag = 'smem constant byte address 0x4 - core index']
  #allocation1 [shape = 'u32[144,128]{1,0:T(1,128)}', space=vmem, size = 0x12000, scoped, tag = 'internal scratch']
  %s0 = inlined_call_operand.vmem [shape: f32[8,256], index: 0, kind: input, shape index: {}]
  %s1 = inlined_call_operand.vmem [shape: f32[8,1], index: 1, kind: input, shape index: {}]
  %s2 = inlined_call_operand.vmem [shape: f32[8,1], index: 2, kind: input, shape index: {}]
  %s3 = inlined_call_operand.hbm [shape: f32[8,256], index: 3, kind: output, shape index: {}]
  %s4 = sld [smem:[#allocation0]]
  $region22: #{tpu_custom_call.1} parent=0
    _
  %s6 = ssub.s32 1, %s4
  %s7 = scalar_select 0, %s6, %s4
  $region1: #{tpu_custom_call.1} parent=0
    #allocation2 [shape = 'u8[8192]{0}', space=vmem, size = 0x2000, scoped, tag = 'output window, operand 0, single buffered']
    #allocation3 [shape = 's32[1]{0}', space=sflag, size = 0x4, scoped, tag = 'scoped memory for tpu_custom_call.1']
    %8 = vsyncpa [#allocation3], 0
    // Predicated region
    $region2: #{tpu_custom_call.1} parent=1 // pred_check
      _
    $region3: #{tpu_custom_call.1} parent=1 // pred_check_branch
      %10 = sbr.rel (0) target = $region5
    $region4: #{tpu_custom_call.1} parent=1 // pred_region
      _
    $region5: #{tpu_custom_call.1} parent=1 // pred_fallthru
      _
    // Predicated region
    $region6: #{tpu_custom_call.1} parent=1 // pred_check
      _
    $region7: #{tpu_custom_call.1} parent=1 // pred_check_branch
      %12 = sbr.rel (0) target = $region9
    $region8: #{tpu_custom_call.1} parent=1 // pred_region
      _
    $region9: #{tpu_custom_call.1} parent=1 // pred_fallthru
      _
    // Predicated region
    $region10: #{tpu_custom_call.1} parent=1 // pred_check
      _
    $region11: #{tpu_custom_call.1} parent=1 // pred_check_branch
      %14 = sbr.rel (0) target = $region13
    $region12: #{tpu_custom_call.1} parent=1 // pred_region
      _
    $region13: #{tpu_custom_call.1} parent=1 // pred_fallthru
      _
    %v15 = vld [vmem:[%s0] sm:$0xff]
    %v16 = vld [vmem:[%s0 + $0x8] sm:$0xff]
    %v17 = vadd.f32 %v15, %v16
    %18 = vadd.xlane.f32.xlu0 %v17
    %v19 = vpop.xlane.xlu0 %18
    %v20 = vmul.f32 %v15, %v15
    %v21 = vmul.f32 %v16, %v16
    %v22 = vadd.f32 %v20, %v21
    %23 = vadd.xlane.f32.xlu0 %v22
    %v24 = vpop.xlane.xlu0 %23
    %v25 = vmul.f32 %v19, 0.00390625
    %v26 = vmul.f32 %v24, 0.00390625
    %v27 = vmul.f32 %v25, %v25
    %v28 = vsub.f32 %v26, %v27
    %v29 = vmax.f32 %v28, 0.0
    %v30 = vadd.f32 %v29, 1e-05
    %v31 = vrsqrt.pop %v30
    %v32 = vld [vmem:[%s1] sm:$0xff]
    %v33 = vmul.f32 %v31, %v32
    %v34 = vld [vmem:[%s2] sm:$0xff]
    %v35 = vmul.f32 %v25, %v33
    %v36 = vsub.f32 %v34, %v35
    %38 = vset.pattern.permute.xlu0 0
    %39 = vperm.xlu0 %38, %v33
    %v40 = vpop.permute.xlu0 %39
    %v42 = vmul.f32 %v15, %v40
    %v43 = vmul.f32 %v16, %v40
    %45 = vset.pattern.permute.xlu0 0
    %46 = vperm.xlu0 %45, %v36
    %v47 = vpop.permute.xlu0 %46
    %v49 = vadd.f32 %v42, %v47
    %v50 = vadd.f32 %v43, %v47
    %51 = vst [vmem:[#allocation2] sm:$0xff] %v49
    %52 = vst [vmem:[#allocation2 + $0x8] sm:$0xff] %v50
    // Predicated region
    $region14: #{tpu_custom_call.1} parent=1 // pred_check
      _
    $region15: #{tpu_custom_call.1} parent=1 // pred_check_branch
      %54 = sbr.rel (0) target = $region17
    $region16: #{tpu_custom_call.1} parent=1 // pred_region
      %s56 = ssub.s32 256, 256
      %57 = vsyncadd [#allocation3], %s56
      %s59 = sshll.u32 [#allocation2], 4
      %s60 = int_to_ptr.vmem [resolvable:$true] %s59
      %62 = dma.vmem_to_hbm [thread:$0]  %s60, 256, %s3, [#allocation3]
    $region17: #{tpu_custom_call.1} parent=1 // pred_fallthru
      _
    // Predicated region
    $region18: #{tpu_custom_call.1} parent=1 // pred_check
      _
    $region19: #{tpu_custom_call.1} parent=1 // pred_check_branch
      %64 = sbr.rel (0) target = $region21
    $region20: #{tpu_custom_call.1} parent=1 // pred_region
      %65 = dma.done [#allocation3], 256
    $region21: #{tpu_custom_call.1} parent=1 // pred_fallthru
      _
    %66 = vsyncpa [#allocation3], 1

</llo_original>
